<compile_context>
chip_gen: v7x
topology: tpu7x:2x2x1
jax: 0.10.0
libtpu: 0.0.40
codegen_flags: <defaults>
</compile_context>

<pallas_src>
import functools

import jax
import jax.numpy as jnp
from jax import lax
from jax.experimental import pallas as pl
from jax.experimental.pallas import tpu as pltpu


# ----------------------------------------------------------------------------
# Fused kernel: one sample per grid step, both convs, all epilogues.
# ----------------------------------------------------------------------------
def _resblock_kernel(x_ref, w1_ref, b1_ref, w2_ref, b2_ref, mask_ref, o_ref, *,
                     k, wp, n_dot, pp, ho, wo):
    """
    x_ref   : (1, Cin, Lin)        padded+flattened input plane          (bf16)
    w1_ref  : (Cmid, k*k*Cin)      conv1 weights, tap-major stacked K    (bf16)
    b1_ref  : (Cmid, 1)            conv1 bias                            (f32)
    w2_ref  : (Cout, k*k*Cmid)     conv2 weights, tap-major stacked K    (bf16)
    b2_ref  : (Cout, 1)            conv2 bias                            (f32)
    mask_ref: (1, n_dot)           1.0 on valid wide positions, else 0.0 (f32)
    o_ref   : (1, Cout, ho*wo)     compact output plane
    """
    offs = [kh * wp + kw for kh in range(k) for kw in range(k)]
    cmid = w1_ref.shape[0]

    # ---- conv1: stack the k*k shifted bf16 windows along sublanes -> one dot
    x = x_ref[0]                                                      # (Cin, Lin) bf16
    a1 = jnp.concatenate([x[:, off:off + n_dot] for off in offs], axis=0)
    h = jnp.dot(w1_ref[...], a1, preferred_element_type=jnp.float32)  # (Cmid, n_dot) f32
    # bias + ReLU + in-register re-zero-pad of the intermediate (f32 epilogue)
    h = jnp.maximum(h + b1_ref[...], 0.0) * mask_ref[...]
    hb = h.astype(jnp.bfloat16)                                       # bf16 intermediate

    # ---- rebuild conv2's zero-padded input purely in registers:
    #      padded2[g] = h[g - pp]  (zeros for the border / tail), via zero-prefix.
    pieces = []
    if pp > 0:
        pieces.append(jnp.zeros((cmid, pp), jnp.bfloat16))
    pieces.append(hb)
    post = offs[-1] - pp
    if post > 0:
        pieces.append(jnp.zeros((cmid, post), jnp.bfloat16))
    buf2 = jnp.concatenate(pieces, axis=-1) if len(pieces) > 1 else pieces[0]

    # ---- conv2: same stacked-K single matmul + f32 bias/ReLU epilogue
    a2 = jnp.concatenate([buf2[:, off:off + n_dot] for off in offs], axis=0)
    y = jnp.dot(w2_ref[...], a2, preferred_element_type=jnp.float32)  # (Cout, n_dot) f32
    y = jnp.maximum(y + b2_ref[...], 0.0)

    # ---- fold the wide->compact crop into the kernel: dense (Cout, ho*wo) store
    out = jnp.concatenate([y[:, r * wp: r * wp + wo] for r in range(ho)], axis=-1)
    o_ref[0] = out.astype(o_ref.dtype)


# ----------------------------------------------------------------------------
# Wrapper: whole ResBlock forward in a single pallas_call.
# ----------------------------------------------------------------------------
def resblock_forward(x, params, *, kernel_size=3, stride=1, padding=1,
                     out_dtype=jnp.float32):
    """x: (N, Cin, H, W) NCHW.  params: w1/b1/w2/b2 in PyTorch layouts."""
    w1, b1, w2, b2 = params["w1"], params["b1"], params["w2"], params["b2"]
    n, cin, h, w = x.shape
    cout1, cin1, k, k2 = w1.shape
    cout2, cmid2, k3, k4 = w2.shape
    assert cin1 == cin and cmid2 == cout1 and k == k2 == k3 == k4 == kernel_size
    # Fused path assumes the 'same'-conv configuration the ResBlock uses.
    assert stride == 1 and 2 * padding == kernel_size - 1

    p = padding
    wp = w + 2 * p                              # padded row stride of the flat layout
    hp = h + 2 * p
    ho, wo = h, w                               # 'same' conv: spatial preserved
    l_wide = ho * wp                            # "wide" flat output length per conv
    n_dot = ((l_wide + 127) // 128) * 128       # lane-dense matmul width
    max_off = (k - 1) * (wp + 1)                # largest tap offset in flat coords
    pp = p * (wp + 1)                           # shift that re-pads the intermediate

    # --- host-side prep: one cast + one pad + one reshape for the whole block
    rows = max(hp, -(-(n_dot + max_off) // wp))  # enough zero rows below the image
    lin = rows * wp
    xflat = jnp.pad(x.astype(jnp.bfloat16),
                    ((0, 0), (0, 0), (p, rows - h - p), (p, p))).reshape(n, cin, lin)

    # weights (Cout, Cin, kh, kw) -> (Cout, k*k*Cin), tap-major (matches stacking)
    w1r = jnp.transpose(w1, (0, 2, 3, 1)).reshape(cout1, k * k * cin).astype(jnp.bfloat16)
    w2r = jnp.transpose(w2, (0, 2, 3, 1)).reshape(cout2, k * k * cout1).astype(jnp.bfloat16)
    b1r = b1.reshape(cout1, 1).astype(jnp.float32)
    b2r = b2.reshape(cout2, 1).astype(jnp.float32)

    # validity mask for the wide intermediate (zero out pad/garbage columns & tail)
    idx = jnp.arange(n_dot)
    mask = ((idx < l_wide) & (idx % wp < wo)).astype(jnp.float32)[None, :]

    l_out = ho * wo
    kk = k * k
    flops = 2 * n * n_dot * (cout1 * kk * cin + cout2 * kk * cout1)
    bytes_accessed = (xflat.size * 2 + (w1r.size + w2r.size) * 2
                      + (b1r.size + b2r.size + mask.size) * 4
                      + n * cout2 * l_out * jnp.dtype(out_dtype).itemsize)

    out = pl.pallas_call(
        functools.partial(_resblock_kernel, k=k, wp=wp, n_dot=n_dot, pp=pp,
                          ho=ho, wo=wo),
        out_shape=jax.ShapeDtypeStruct((n, cout2, l_out), out_dtype),
        grid=(n,),
        in_specs=[
            pl.BlockSpec((1, cin, lin), lambda i: (i, 0, 0)),          # sample plane
            pl.BlockSpec((cout1, kk * cin), lambda i: (0, 0)),         # conv1 weights
            pl.BlockSpec((cout1, 1), lambda i: (0, 0)),                # conv1 bias
            pl.BlockSpec((cout2, kk * cout1), lambda i: (0, 0)),       # conv2 weights
            pl.BlockSpec((cout2, 1), lambda i: (0, 0)),                # conv2 bias
            pl.BlockSpec((1, n_dot), lambda i: (0, 0)),                # validity mask
        ],
        out_specs=pl.BlockSpec((1, cout2, l_out), lambda i: (i, 0, 0)),
        compiler_params=pltpu.CompilerParams(
            dimension_semantics=("parallel",),        # megacore sharding on v7x
            vmem_limit_bytes=32 * 1024 * 1024,        # safe on v5e/v6e/v7x; tiny footprint
        ),
        cost_estimate=pl.CostEstimate(flops=flops, transcendentals=0,
                                      bytes_accessed=bytes_accessed),
    )(xflat, w1r, b1r, w2r, b2r, mask)

    return out.reshape(n, cout2, ho, wo)


# ----------------------------------------------------------------------------
# Pure-JAX reference (same bf16-operand / f32-accumulate numerics)
# ----------------------------------------------------------------------------
def resblock_reference(x, params, *, padding=1):
    def conv(xx, w, b):
        y = lax.conv_general_dilated(
            xx.astype(jnp.bfloat16), w.astype(jnp.bfloat16),
            window_strides=(1, 1), padding=[(padding, padding)] * 2,
            dimension_numbers=("NCHW", "OIHW", "NCHW"),
            preferred_element_type=jnp.float32)
        y = y + b[None, :, None, None]
        return jnp.maximum(y, 0.0)

    h = conv(x, params["w1"], params["b1"])
    h = h.astype(jnp.bfloat16).astype(jnp.float32)   # mirror bf16 intermediate
    return conv(h, params["w2"], params["b2"])


if __name__ == "__main__":
    key = jax.random.PRNGKey(0)
    k_x, k_w1, k_b1, k_w2, k_b2 = jax.random.split(key, 5)

    # ResBlock(input_size=4, output_size=4, kernel_size=3, stride=1, padding=1)
    N, C, H, W = 2, 4, 16, 16
    K = 3
    x = jax.random.normal(k_x, (N, C, H, W), dtype=jnp.float32)
    params = {
        "w1": (0.1 * jax.random.normal(k_w1, (C, C, K, K))).astype(jnp.float32),
        "b1": (0.05 * jax.random.normal(k_b1, (C,))).astype(jnp.float32),
        "w2": (0.1 * jax.random.normal(k_w2, (C, C, K, K))).astype(jnp.float32),
        "b2": (0.05 * jax.random.normal(k_b2, (C,))).astype(jnp.float32),
    }

    out = jax.jit(resblock_forward)(x, params)
    out = jax.block_until_ready(out)
    assert out.shape == (N, C, H, W), out.shape

    ref = resblock_reference(x, params)
    max_err = float(jnp.max(jnp.abs(out - ref)))
    assert jnp.allclose(out, ref, atol=2e-2, rtol=2e-2), max_err

    print("KERNEL_OK")
</pallas_src>

<mosaic_0001>
module attributes {stable_mosaic.version = 11 : i64} {
  func.func @_resblock_kernel(%arg0: i32, %arg1: memref<1x4x432xbf16, #tpu.memory_space<vmem>>, %arg2: memref<4x36xbf16, #tpu.memory_space<vmem>>, %arg3: memref<4x1xf32, #tpu.memory_space<vmem>>, %arg4: memref<4x36xbf16, #tpu.memory_space<vmem>>, %arg5: memref<4x1xf32, #tpu.memory_space<vmem>>, %arg6: memref<1x384xf32, #tpu.memory_space<vmem>>, %arg7: memref<1x4x256xf32, #tpu.memory_space<vmem>>) attributes {dimension_semantics = [#tpu.dimension_semantics<parallel>], iteration_bounds = array<i64: 2>, scalar_prefetch = 0 : i64, scratch_operands = 0 : i64, tpu.core_type = #tpu.core_type<tc>, window_params = [{transform_indices = @transform_0, window_bounds = array<i64: 1, 4, 432>}, {pipeline_mode = #tpu.pipeline_mode<synchronous>, transform_indices = @transform_1, window_bounds = array<i64: 4, 36>}, {pipeline_mode = #tpu.pipeline_mode<synchronous>, transform_indices = @transform_2, window_bounds = array<i64: 4, 1>}, {pipeline_mode = #tpu.pipeline_mode<synchronous>, transform_indices = @transform_3, window_bounds = array<i64: 4, 36>}, {pipeline_mode = #tpu.pipeline_mode<synchronous>, transform_indices = @transform_4, window_bounds = array<i64: 4, 1>}, {pipeline_mode = #tpu.pipeline_mode<synchronous>, transform_indices = @transform_5, window_bounds = array<i64: 1, 384>}, {transform_indices = @transform_6, window_bounds = array<i64: 1, 4, 256>}]} {
    %c0 = arith.constant 0 : index
    %c0_0 = arith.constant 0 : index
    %c0_1 = arith.constant 0 : index
    %0 = vector.load %arg1[%c0, %c0_0, %c0_1] : memref<1x4x432xbf16, #tpu.memory_space<vmem>>, vector<1x4x432xbf16>
    %1 = vector.shape_cast %0 : vector<1x4x432xbf16> to vector<4x432xbf16>
    %2 = vector.extract_strided_slice %1 {offsets = [0, 0], sizes = [4, 384], strides = [1, 1]} : vector<4x432xbf16> to vector<4x384xbf16>
    %3 = vector.extract_strided_slice %1 {offsets = [0, 1], sizes = [4, 384], strides = [1, 1]} : vector<4x432xbf16> to vector<4x384xbf16>
    %4 = vector.extract_strided_slice %1 {offsets = [0, 2], sizes = [4, 384], strides = [1, 1]} : vector<4x432xbf16> to vector<4x384xbf16>
    %5 = vector.extract_strided_slice %1 {offsets = [0, 18], sizes = [4, 384], strides = [1, 1]} : vector<4x432xbf16> to vector<4x384xbf16>
    %6 = vector.extract_strided_slice %1 {offsets = [0, 19], sizes = [4, 384], strides = [1, 1]} : vector<4x432xbf16> to vector<4x384xbf16>
    %7 = vector.extract_strided_slice %1 {offsets = [0, 20], sizes = [4, 384], strides = [1, 1]} : vector<4x432xbf16> to vector<4x384xbf16>
    %8 = vector.extract_strided_slice %1 {offsets = [0, 36], sizes = [4, 384], strides = [1, 1]} : vector<4x432xbf16> to vector<4x384xbf16>
    %9 = vector.extract_strided_slice %1 {offsets = [0, 37], sizes = [4, 384], strides = [1, 1]} : vector<4x432xbf16> to vector<4x384xbf16>
    %10 = vector.extract_strided_slice %1 {offsets = [0, 38], sizes = [4, 384], strides = [1, 1]} : vector<4x432xbf16> to vector<4x384xbf16>
    %11 = tpu.concatenate %2, %3, %4, %5, %6, %7, %8, %9, %10 in 0 : vector<4x384xbf16>, vector<4x384xbf16>, vector<4x384xbf16>, vector<4x384xbf16>, vector<4x384xbf16>, vector<4x384xbf16>, vector<4x384xbf16>, vector<4x384xbf16>, vector<4x384xbf16> -> vector<36x384xbf16>
    %c0_2 = arith.constant 0 : index
    %c0_3 = arith.constant 0 : index
    %12 = vector.load %arg2[%c0_2, %c0_3] : memref<4x36xbf16, #tpu.memory_space<vmem>>, vector<4x36xbf16>
    %cst = arith.constant dense<0.000000e+00> : vector<4x384xf32>
    %13 = tpu.matmul %12, %11, %cst {dimension_numbers = #tpu.dot_dimension_numbers<[1], [0], [0], [1], [0, 0, 1, 1], [], []>} : vector<4x36xbf16>, vector<36x384xbf16>, vector<4x384xf32> -> vector<4x384xf32>
    %c0_4 = arith.constant 0 : index
    %c0_5 = arith.constant 0 : index
    %14 = vector.load %arg3[%c0_4, %c0_5] : memref<4x1xf32, #tpu.memory_space<vmem>>, vector<4x1xf32>
    %15 = vector.broadcast %14 : vector<4x1xf32> to vector<4x384xf32>
    %16 = arith.addf %13, %15 : vector<4x384xf32>
    %cst_6 = arith.constant 0.000000e+00 : f32
    %17 = vector.broadcast %cst_6 : f32 to vector<4x384xf32>
    %18 = arith.maximumf %16, %17 : vector<4x384xf32>
    %c0_7 = arith.constant 0 : index
    %c0_8 = arith.constant 0 : index
    %19 = vector.load %arg6[%c0_7, %c0_8] : memref<1x384xf32, #tpu.memory_space<vmem>>, vector<1x384xf32>
    %20 = vector.broadcast %19 : vector<1x384xf32> to vector<4x384xf32>
    %21 = arith.mulf %18, %20 : vector<4x384xf32>
    %22 = arith.truncf %21 : vector<4x384xf32> to vector<4x384xbf16>
    %cst_9 = arith.constant 0.000000e+00 : bf16
    %23 = vector.broadcast %cst_9 : bf16 to vector<4x19xbf16>
    %cst_10 = arith.constant 0.000000e+00 : bf16
    %24 = vector.broadcast %cst_10 : bf16 to vector<4x19xbf16>
    %25 = tpu.concatenate %23, %22, %24 in 1 : vector<4x19xbf16>, vector<4x384xbf16>, vector<4x19xbf16> -> vector<4x422xbf16>
    %26 = vector.extract_strided_slice %25 {offsets = [0, 0], sizes = [4, 384], strides = [1, 1]} : vector<4x422xbf16> to vector<4x384xbf16>
    %27 = vector.extract_strided_slice %25 {offsets = [0, 1], sizes = [4, 384], strides = [1, 1]} : vector<4x422xbf16> to vector<4x384xbf16>
    %28 = vector.extract_strided_slice %25 {offsets = [0, 2], sizes = [4, 384], strides = [1, 1]} : vector<4x422xbf16> to vector<4x384xbf16>
    %29 = vector.extract_strided_slice %25 {offsets = [0, 18], sizes = [4, 384], strides = [1, 1]} : vector<4x422xbf16> to vector<4x384xbf16>
    %30 = vector.extract_strided_slice %25 {offsets = [0, 19], sizes = [4, 384], strides = [1, 1]} : vector<4x422xbf16> to vector<4x384xbf16>
    %31 = vector.extract_strided_slice %25 {offsets = [0, 20], sizes = [4, 384], strides = [1, 1]} : vector<4x422xbf16> to vector<4x384xbf16>
    %32 = vector.extract_strided_slice %25 {offsets = [0, 36], sizes = [4, 384], strides = [1, 1]} : vector<4x422xbf16> to vector<4x384xbf16>
    %33 = vector.extract_strided_slice %25 {offsets = [0, 37], sizes = [4, 384], strides = [1, 1]} : vector<4x422xbf16> to vector<4x384xbf16>
    %34 = vector.extract_strided_slice %25 {offsets = [0, 38], sizes = [4, 384], strides = [1, 1]} : vector<4x422xbf16> to vector<4x384xbf16>
    %35 = tpu.concatenate %26, %27, %28, %29, %30, %31, %32, %33, %34 in 0 : vector<4x384xbf16>, vector<4x384xbf16>, vector<4x384xbf16>, vector<4x384xbf16>, vector<4x384xbf16>, vector<4x384xbf16>, vector<4x384xbf16>, vector<4x384xbf16>, vector<4x384xbf16> -> vector<36x384xbf16>
    %c0_11 = arith.constant 0 : index
    %c0_12 = arith.constant 0 : index
    %36 = vector.load %arg4[%c0_11, %c0_12] : memref<4x36xbf16, #tpu.memory_space<vmem>>, vector<4x36xbf16>
    %cst_13 = arith.constant dense<0.000000e+00> : vector<4x384xf32>
    %37 = tpu.matmul %36, %35, %cst_13 {dimension_numbers = #tpu.dot_dimension_numbers<[1], [0], [0], [1], [0, 0, 1, 1], [], []>} : vector<4x36xbf16>, vector<36x384xbf16>, vector<4x384xf32> -> vector<4x384xf32>
    %c0_14 = arith.constant 0 : index
    %c0_15 = arith.constant 0 : index
    %38 = vector.load %arg5[%c0_14, %c0_15] : memref<4x1xf32, #tpu.memory_space<vmem>>, vector<4x1xf32>
    %39 = vector.broadcast %38 : vector<4x1xf32> to vector<4x384xf32>
    %40 = arith.addf %37, %39 : vector<4x384xf32>
    %cst_16 = arith.constant 0.000000e+00 : f32
    %41 = vector.broadcast %cst_16 : f32 to vector<4x384xf32>
    %42 = arith.maximumf %40, %41 : vector<4x384xf32>
    %43 = vector.extract_strided_slice %42 {offsets = [0, 0], sizes = [4, 16], strides = [1, 1]} : vector<4x384xf32> to vector<4x16xf32>
    %44 = vector.extract_strided_slice %42 {offsets = [0, 18], sizes = [4, 16], strides = [1, 1]} : vector<4x384xf32> to vector<4x16xf32>
    %45 = vector.extract_strided_slice %42 {offsets = [0, 36], sizes = [4, 16], strides = [1, 1]} : vector<4x384xf32> to vector<4x16xf32>
    %46 = vector.extract_strided_slice %42 {offsets = [0, 54], sizes = [4, 16], strides = [1, 1]} : vector<4x384xf32> to vector<4x16xf32>
    %47 = vector.extract_strided_slice %42 {offsets = [0, 72], sizes = [4, 16], strides = [1, 1]} : vector<4x384xf32> to vector<4x16xf32>
    %48 = vector.extract_strided_slice %42 {offsets = [0, 90], sizes = [4, 16], strides = [1, 1]} : vector<4x384xf32> to vector<4x16xf32>
    %49 = vector.extract_strided_slice %42 {offsets = [0, 108], sizes = [4, 16], strides = [1, 1]} : vector<4x384xf32> to vector<4x16xf32>
    %50 = vector.extract_strided_slice %42 {offsets = [0, 126], sizes = [4, 16], strides = [1, 1]} : vector<4x384xf32> to vector<4x16xf32>
    %51 = vector.extract_strided_slice %42 {offsets = [0, 144], sizes = [4, 16], strides = [1, 1]} : vector<4x384xf32> to vector<4x16xf32>
    %52 = vector.extract_strided_slice %42 {offsets = [0, 162], sizes = [4, 16], strides = [1, 1]} : vector<4x384xf32> to vector<4x16xf32>
    %53 = vector.extract_strided_slice %42 {offsets = [0, 180], sizes = [4, 16], strides = [1, 1]} : vector<4x384xf32> to vector<4x16xf32>
    %54 = vector.extract_strided_slice %42 {offsets = [0, 198], sizes = [4, 16], strides = [1, 1]} : vector<4x384xf32> to vector<4x16xf32>
    %55 = vector.extract_strided_slice %42 {offsets = [0, 216], sizes = [4, 16], strides = [1, 1]} : vector<4x384xf32> to vector<4x16xf32>
    %56 = vector.extract_strided_slice %42 {offsets = [0, 234], sizes = [4, 16], strides = [1, 1]} : vector<4x384xf32> to vector<4x16xf32>
    %57 = vector.extract_strided_slice %42 {offsets = [0, 252], sizes = [4, 16], strides = [1, 1]} : vector<4x384xf32> to vector<4x16xf32>
    %58 = vector.extract_strided_slice %42 {offsets = [0, 270], sizes = [4, 16], strides = [1, 1]} : vector<4x384xf32> to vector<4x16xf32>
    %59 = tpu.concatenate %43, %44, %45, %46, %47, %48, %49, %50, %51, %52, %53, %54, %55, %56, %57, %58 in 1 : vector<4x16xf32>, vector<4x16xf32>, vector<4x16xf32>, vector<4x16xf32>, vector<4x16xf32>, vector<4x16xf32>, vector<4x16xf32>, vector<4x16xf32>, vector<4x16xf32>, vector<4x16xf32>, vector<4x16xf32>, vector<4x16xf32>, vector<4x16xf32>, vector<4x16xf32>, vector<4x16xf32>, vector<4x16xf32> -> vector<4x256xf32>
    %c0_17 = arith.constant 0 : index
    %c0_18 = arith.constant 0 : index
    %c0_19 = arith.constant 0 : index
    %60 = vector.load %arg7[%c0_17, %c0_18, %c0_19] : memref<1x4x256xf32, #tpu.memory_space<vmem>>, vector<1x4x256xf32>
    %61 = vector.shape_cast %60 : vector<1x4x256xf32> to vector<4x256xf32>
    %62 = vector.shape_cast %59 : vector<4x256xf32> to vector<1x4x256xf32>
    tpu.vector_store %arg7[%c0_17, %c0_18, %c0_19], %62 {strides = array<i32>} : memref<1x4x256xf32, #tpu.memory_space<vmem>>, vector<1x4x256xf32>,
    return
  }
  func.func @transform_0(%arg0: i32) -> (i32, i32, i32) {
    %c0_i32 = arith.constant 0 : i32
    %c0_i32_0 = arith.constant 0 : i32
    %c0_i32_1 = arith.constant 0 : i32
    return %arg0, %c0_i32, %c0_i32_0 : i32, i32, i32
  }
  func.func @transform_1(%arg0: i32) -> (i32, i32) {
    %c0_i32 = arith.constant 0 : i32
    %c0_i32_0 = arith.constant 0 : i32
    %c0_i32_1 = arith.constant 0 : i32
    return %c0_i32, %c0_i32_0 : i32, i32
  }
  func.func @transform_2(%arg0: i32) -> (i32, i32) {
    %c0_i32 = arith.constant 0 : i32
    %c0_i32_0 = arith.constant 0 : i32
    %c0_i32_1 = arith.constant 0 : i32
    return %c0_i32, %c0_i32_0 : i32, i32
  }
  func.func @transform_3(%arg0: i32) -> (i32, i32) {
    %c0_i32 = arith.constant 0 : i32
    %c0_i32_0 = arith.constant 0 : i32
    %c0_i32_1 = arith.constant 0 : i32
    return %c0_i32, %c0_i32_0 : i32, i32
  }
  func.func @transform_4(%arg0: i32) -> (i32, i32) {
    %c0_i32 = arith.constant 0 : i32
    %c0_i32_0 = arith.constant 0 : i32
    %c0_i32_1 = arith.constant 0 : i32
    return %c0_i32, %c0_i32_0 : i32, i32
  }
  func.func @transform_5(%arg0: i32) -> (i32, i32) {
    %c0_i32 = arith.constant 0 : i32
    %c0_i32_0 = arith.constant 0 : i32
    %c0_i32_1 = arith.constant 0 : i32
    return %c0_i32, %c0_i32_0 : i32, i32
  }
  func.func @transform_6(%arg0: i32) -> (i32, i32, i32) {
    %c0_i32 = arith.constant 0 : i32
    %c0_i32_0 = arith.constant 0 : i32
    %c0_i32_1 = arith.constant 0 : i32
    return %arg0, %c0_i32, %c0_i32_0 : i32, i32, i32
  }
}

</mosaic_0001>

<llo_original>
// kernel: resblock_forward.1
$region0: #{resblock_forward.1}
  #allocation0 [shape = 'u32[]', space=smem, size = 0x4, offset = 0x4, fixed_abs, tag = 'smem constant byte address 0x4 - core index']
  #allocation1 [shape = 'u32[144,128]{1,0:T(1,128)}', space=vmem, size = 0x12000, scoped, tag = 'internal scratch']
  %s0 = inlined_call_operand.vmem [shape: bf16[2,4,432], index: 0, kind: input, shape index: {}]
  %s1 = inlined_call_operand.vmem [shape: bf16[4,36], index: 1, kind: input, shape index: {}]
  %s2 = inlined_call_operand.vmem [shape: f32[4,1], index: 2, kind: input, shape index: {}]
  %s3 = inlined_call_operand.vmem [shape: bf16[4,36], index: 3, kind: input, shape index: {}]
  %s4 = inlined_call_operand.vmem [shape: f32[4,1], index: 4, kind: input, shape index: {}]
  %s5 = inlined_call_operand.vmem [shape: f32[1,384], index: 5, kind: input, shape index: {}]
  %s6 = inlined_call_operand.vmem [shape: f32[2,4,256], index: 6, kind: output, shape index: {}]
  %s7 = sld [smem:[#allocation0]]
  $region57: #{resblock_forward.1} parent=0
    _
  %s9 = ssub.s32 1, %s7
  %s10 = scalar_select 0, %s9, %s7
  loop: start=0, step=1, limit=4
  $region2: #{resblock_forward.1} parent=0 // loop_pre_header
    _
  $region3: #{resblock_forward.1} parent=0 // loop_header
    %s12 = sphi 0, %s16
    %p13 = scmp.ge.s32.totalorder %s12, 4
    %s22 = sphi 0, %s24
    %s25 = sphi 0, %s22
    %s26 = sphi 0, %s25
    %s42 = sphi 0, %s26
    %s46 = sphi 0, %s46
    %s48 = sphi 0, %s46
    %s49 = sphi 0, %s48
    %s63 = sphi 0, %s49
    %s67 = sphi 0, %s67
    %s69 = sphi 0, %s67
    %s70 = sphi 0, %s69
    %s84 = sphi 0, %s70
    %s88 = sphi 0, %s88
    %s90 = sphi 0, %s88
    %s91 = sphi 0, %s90
    %s105 = sphi 0, %s91
    %s109 = sphi 0, %s109
    %s111 = sphi 0, %s109
    %s112 = sphi 0, %s111
    %s126 = sphi 0, %s112
    %s130 = sphi 0, %s130
    %s132 = sphi 0, %s130
    %s133 = sphi 0, %s132
    %s147 = sphi 0, %s133
    %s153 = sphi 0, %s155
    %s156 = sphi 0, %s153
    %s157 = sphi 0, %s156
    %s173 = sphi 0, %s157
  $region4: #{resblock_forward.1} parent=0 // loop_header_branch
    %15 = sbr.rel (%p13) target = $region8
  $region5: #{resblock_forward.1} parent=0 // loop_body
    %s17 = ssub.s32 %s12, 1
    %s18 = ssub.s32 %s12, 2
    %s19 = sadd.s32 %s12, 1
    %s20 = ssub.s32 %s12, %s19
    %p21 = scmp.eq.s32.totalorder %s20, 0
    %s23 = sadd.s32 %s22, 1
    %s24 = scalar_select %p21, %s22, %s23
    %p27 = pneg %p21
    %p28 = scmp.eq.s32.totalorder %s12, 1
    %p29 = por %p27, %p28
    %p30 = scmp.ne.s32.totalorder %s22, %s25
    %p31 = scmp.eq.s32.totalorder %s12, 0
    %p32 = por %p30, %p31
    %p33 = scmp.ne.s32.totalorder %s22, %s25
    %p34 = scmp.eq.s32.totalorder %s17, 1
    %p35 = por %p33, %p34
    %p36 = scmp.ne.s32.totalorder %s25, %s26
    %p37 = scmp.eq.s32.totalorder %s17, 0
    %p38 = por %p36, %p37
    %p39 = scmp.ne.s32.totalorder %s25, %s26
    %p40 = scmp.eq.s32.totalorder %s18, 1
    %p41 = por %p39, %p40
    %p43 = scmp.ne.s32.totalorder %s26, %s42
    %p44 = scmp.eq.s32.totalorder %s18, 0
    %p45 = por %p43, %p44
    %s47 = sadd.s32 %s46, 1
    %p50 = scmp.eq.s32.totalorder %s12, 1
    %p51 = scmp.ne.s32.totalorder %s46, %s48
    %p52 = scmp.eq.s32.totalorder %s12, 0
    %p53 = por %p51, %p52
    %p54 = scmp.ne.s32.totalorder %s46, %s48
    %p55 = scmp.eq.s32.totalorder %s17, 1
    %p56 = por %p54, %p55
    %p57 = scmp.ne.s32.totalorder %s48, %s49
    %p58 = scmp.eq.s32.totalorder %s17, 0
    %p59 = por %p57, %p58
    %p60 = scmp.ne.s32.totalorder %s48, %s49
    %p61 = scmp.eq.s32.totalorder %s18, 1
    %p62 = por %p60, %p61
    %p64 = scmp.ne.s32.totalorder %s49, %s63
    %p65 = scmp.eq.s32.totalorder %s18, 0
    %p66 = por %p64, %p65
    %s68 = sadd.s32 %s67, 1
    %p71 = scmp.eq.s32.totalorder %s12, 1
    %p72 = scmp.ne.s32.totalorder %s67, %s69
    %p73 = scmp.eq.s32.totalorder %s12, 0
    %p74 = por %p72, %p73
    %p75 = scmp.ne.s32.totalorder %s67, %s69
    %p76 = scmp.eq.s32.totalorder %s17, 1
    %p77 = por %p75, %p76
    %p78 = scmp.ne.s32.totalorder %s69, %s70
    %p79 = scmp.eq.s32.totalorder %s17, 0
    %p80 = por %p78, %p79
    %p81 = scmp.ne.s32.totalorder %s69, %s70
    %p82 = scmp.eq.s32.totalorder %s18, 1
    %p83 = por %p81, %p82
    %p85 = scmp.ne.s32.totalorder %s70, %s84
    %p86 = scmp.eq.s32.totalorder %s18, 0
    %p87 = por %p85, %p86
    %s89 = sadd.s32 %s88, 1
    %p92 = scmp.eq.s32.totalorder %s12, 1
    %p93 = scmp.ne.s32.totalorder %s88, %s90
    %p94 = scmp.eq.s32.totalorder %s12, 0
    %p95 = por %p93, %p94
    %p96 = scmp.ne.s32.totalorder %s88, %s90
    %p97 = scmp.eq.s32.totalorder %s17, 1
    %p98 = por %p96, %p97
    %p99 = scmp.ne.s32.totalorder %s90, %s91
    %p100 = scmp.eq.s32.totalorder %s17, 0
    %p101 = por %p99, %p100
    %p102 = scmp.ne.s32.totalorder %s90, %s91
    %p103 = scmp.eq.s32.totalorder %s18, 1
    %p104 = por %p102, %p103
    %p106 = scmp.ne.s32.totalorder %s91, %s105
    %p107 = scmp.eq.s32.totalorder %s18, 0
    %p108 = por %p106, %p107
    %s110 = sadd.s32 %s109, 1
    %p113 = scmp.eq.s32.totalorder %s12, 1
    %p114 = scmp.ne.s32.totalorder %s109, %s111
    %p115 = scmp.eq.s32.totalorder %s12, 0
    %p116 = por %p114, %p115
    %p117 = scmp.ne.s32.totalorder %s109, %s111
    %p118 = scmp.eq.s32.totalorder %s17, 1
    %p119 = por %p117, %p118
    %p120 = scmp.ne.s32.totalorder %s111, %s112
    %p121 = scmp.eq.s32.totalorder %s17, 0
    %p122 = por %p120, %p121
    %p123 = scmp.ne.s32.totalorder %s111, %s112
    %p124 = scmp.eq.s32.totalorder %s18, 1
    %p125 = por %p123, %p124
    %p127 = scmp.ne.s32.totalorder %s112, %s126
    %p128 = scmp.eq.s32.totalorder %s18, 0
    %p129 = por %p127, %p128
    %s131 = sadd.s32 %s130, 1
    %p134 = scmp.eq.s32.totalorder %s12, 1
    %p135 = scmp.ne.s32.totalorder %s130, %s132
    %p136 = scmp.eq.s32.totalorder %s12, 0
    %p137 = por %p135, %p136
    %p138 = scmp.ne.s32.totalorder %s130, %s132
    %p139 = scmp.eq.s32.totalorder %s17, 1
    %p140 = por %p138, %p139
    %p141 = scmp.ne.s32.totalorder %s132, %s133
    %p142 = scmp.eq.s32.totalorder %s17, 0
    %p143 = por %p141, %p142
    %p144 = scmp.ne.s32.totalorder %s132, %s133
    %p145 = scmp.eq.s32.totalorder %s18, 1
    %p146 = por %p144, %p145
    %p148 = scmp.ne.s32.totalorder %s133, %s147
    %p149 = scmp.eq.s32.totalorder %s18, 0
    %p150 = por %p148, %p149
    %s151 = ssub.s32 %s12, %s19
    %p152 = scmp.eq.s32.totalorder %s151, 0
    %s154 = sadd.s32 %s153, 1
    %s155 = scalar_select %p152, %s153, %s154
    %p158 = pneg %p152
    %p159 = scmp.eq.s32.totalorder %s12, 1
    %p160 = por %p158, %p159
    %p161 = scmp.ne.s32.totalorder %s153, %s156
    %p162 = scmp.eq.s32.totalorder %s12, 0
    %p163 = por %p161, %p162
    %p164 = scmp.ne.s32.totalorder %s153, %s156
    %p165 = scmp.eq.s32.totalorder %s17, 1
    %p166 = por %p164, %p165
    %p167 = scmp.ne.s32.totalorder %s156, %s157
    %p168 = scmp.eq.s32.totalorder %s17, 0
    %p169 = por %p167, %p168
    %p170 = scmp.ne.s32.totalorder %s156, %s157
    %p171 = scmp.eq.s32.totalorder %s18, 1
    %p172 = por %p170, %p171
    %p174 = scmp.ne.s32.totalorder %s157, %s173
    %p175 = scmp.eq.s32.totalorder %s18, 0
    %p176 = por %p174, %p175
    %p177 = scmp.le.s32.totalorder 1, %s12
    %p178 = scmp.lt.s32.totalorder %s12, 3
    %p179 = pnand %p177, %p178
    %p180 = pneg %p179
    // Predicated region
    $region9: #{resblock_forward.1} parent=5 // pred_check
      _
    $region10: #{resblock_forward.1} parent=5 // pred_check_branch
      %182 = sbr.rel (%p179) target = $region12
    $region11: #{resblock_forward.1} parent=5 // pred_region
      %s183 = ssub.s32 %s12, 1
      // Predicated region
      $region13: #{resblock_forward.1} parent=11 // pred_check
        %p184 = pneg %p59
      $region14: #{resblock_forward.1} parent=11 // pred_check_branch
        %186 = sbr.rel (%p184) target = $region16
      $region15: #{resblock_forward.1} parent=11 // pred_region
        _
      $region16: #{resblock_forward.1} parent=11 // pred_fallthru
        _
      // Predicated region
      $region17: #{resblock_forward.1} parent=11 // pred_check
        %p187 = pneg %p80
      $region18: #{resblock_forward.1} parent=11 // pred_check_branch
        %189 = sbr.rel (%p187) target = $region20
      $region19: #{resblock_forward.1} parent=11 // pred_region
        _
      $region20: #{resblock_forward.1} parent=11 // pred_fallthru
        _
      // Predicated region
      $region21: #{resblock_forward.1} parent=11 // pred_check
        %p190 = pneg %p101
      $region22: #{resblock_forward.1} parent=11 // pred_check_branch
        %192 = sbr.rel (%p190) target = $region24
      $region23: #{resblock_forward.1} parent=11 // pred_region
        _
      $region24: #{resblock_forward.1} parent=11 // pred_fallthru
        _
      // Predicated region
      $region25: #{resblock_forward.1} parent=11 // pred_check
        %p193 = pneg %p122
      $region26: #{resblock_forward.1} parent=11 // pred_check_branch
        %195 = sbr.rel (%p193) target = $region28
      $region27: #{resblock_forward.1} parent=11 // pred_region
        _
      $region28: #{resblock_forward.1} parent=11 // pred_fallthru
        _
      // Predicated region
      $region29: #{resblock_forward.1} parent=11 // pred_check
        %p196 = pneg %p143
      $region30: #{resblock_forward.1} parent=11 // pred_check_branch
        %198 = sbr.rel (%p196) target = $region32
      $region31: #{resblock_forward.1} parent=11 // pred_region
        _
      $region32: #{resblock_forward.1} parent=11 // pred_fallthru
        _
    $region12: #{resblock_forward.1} parent=5 // pred_fallthru
      _
    %p199 = scmp.lt.s32.totalorder %s12, 2
    // Predicated region
    $region33: #{resblock_forward.1} parent=5 // pred_check
      %p200 = pneg %p199
    $region34: #{resblock_forward.1} parent=5 // pred_check_branch
      %202 = sbr.rel (%p200) target = $region36
    $region35: #{resblock_forward.1} parent=5 // pred_region
      // Predicated region
      $region37: #{resblock_forward.1} parent=35 // pred_check
        %p203 = pneg %p32
      $region38: #{resblock_forward.1} parent=35 // pred_check_branch
        %205 = sbr.rel (%p203) target = $region40
      $region39: #{resblock_forward.1} parent=35 // pred_region
        %p206 = scmp.lt.s32.totalorder %s12, 1
        %s207 = scalar_select %p206, %s12, 1
        %s208 = smul.addr %s207, 4
        %s209 = smul.addr %s208, 2
        %s210 = scalar_lea.vmem %s0, %s209
      $region40: #{resblock_forward.1} parent=35 // pred_fallthru
        _
    $region36: #{resblock_forward.1} parent=5 // pred_fallthru
      _
    %p211 = scmp.le.s32.totalorder 1, %s12
    %p212 = scmp.lt.s32.totalorder %s12, 3
    %p213 = pnand %p211, %p212
    %p214 = pneg %p213
    // Predicated region
    $region41: #{resblock_forward.1} parent=5 // pred_check
      _
    $region42: #{resblock_forward.1} parent=5 // pred_check_branch
      %216 = sbr.rel (%p213) target = $region44
    $region43: #{resblock_forward.1} parent=5 // pred_region
      %s217 = ssub.s32 %s12, 1
      %p218 = scmp.lt.s32.totalorder %s17, 1
      %s219 = scalar_select %p218, %s17, 1
      %s220 = smul.addr %s219, 4
      %s221 = smul.addr %s220, 2
      %s222 = scalar_lea.vmem %s0, %s221
      %p223 = pneg %p38
      %p224 = pneg %p35
      %p225 = pneg %p59
      %p226 = pneg %p56
      %p227 = pneg %p80
      %p228 = pneg %p77
      %p229 = pneg %p101
      %p230 = pneg %p98
      %p231 = pneg %p122
      %p232 = pneg %p119
      %p233 = pneg %p143
      %p234 = pneg %p140
      %p235 = pneg %p169
      %p236 = pneg %p166
      %p237 = scmp.lt.s32.totalorder %s17, 1
      %s238 = scalar_select %p237, %s17, 1
      %s239 = smul.addr %s238, 2
      %s240 = smul.addr %s239, 4
      %s241 = scalar_lea.vmem %s6, %s240
      %p242 = scmp.lt.s32.totalorder %s17, 1
      %s243 = scalar_select %p242, %s17, 1
      %s244 = smul.addr %s243, 4
      %s245 = smul.addr %s244, 2
      %s246 = scalar_lea.vmem %s0, %s245
      %p247 = scmp.lt.s32.totalorder %s17, 1
      %s248 = scalar_select %p247, %s17, 1
      %s249 = smul.addr %s248, 2
      %s250 = smul.addr %s249, 4
      %s251 = scalar_lea.vmem %s6, %s250
      %v253 = vld [vmem:[%s246] sm:$0xff]
      %v255 = vcombine.high %v253, %v253
      %v257 = vunpack.c.l.s4 1983009808
      %v258 = vunpack.c.0.s8 %v257
      %v259 = vlaneseq
      %v260 = vshrl.u32 %v259, 7
      %v261 = vsub.s32 %v258, %v260
      %v262 = vrot.slane %v253, %v261
      %v264 = vunpack.c.l.s4 1983009808
      %v265 = vunpack.c.0.s8 %v264
      %v266 = vlaneseq
      %v267 = vshrl.u32 %v266, 7
      %v268 = vsub.s32 %v265, %v267
      %v269 = vrot.slane %v255, %v268
      %v270 = vcombine.high %v262, %v262
      %v271 = vcombine.low %v253, %v253
      %v273 = vunpack.c.l.s4 1983009808
      %v274 = vunpack.c.0.s8 %v273
      %v275 = vlaneseq
      %v276 = vshrl.u32 %v275, 7
      %v277 = vsub.s32 %v274, %v276
      %v278 = vrot.slane %v271, %v277
      %v279 = vcombine.high %v278, %v278
      %280 = vrot.lane.b32.xlu0 %v278, 127
      %v281 = vpop.permute.xlu0 %280
      %282 = vrot.lane.b32.xlu0 %v279, 127
      %v283 = vpop.permute.xlu0 %282
      %284 = vrot.lane.b32.xlu0 %v262, 127
      %v285 = vpop.permute.xlu0 %284
      %286 = vrot.lane.b32.xlu0 %v270, 127
      %v287 = vpop.permute.xlu0 %286
      %vm288 = vcmask 1039360
      %v289 = vsel %vm288, %v281, %v283
      %v290 = vsel %vm288, %v283, %v285
      %v291 = vsel %vm288, %v285, %v287
      %v292 = vcombine.low %v262, %v262
      %v293 = vcombine.low %v269, %v269
      %294 = vrot.lane.b32.xlu0 %v292, 126
      %v295 = vpop.permute.xlu0 %294
      %296 = vrot.lane.b32.xlu0 %v262, 126
      %v297 = vpop.permute.xlu0 %296
      %298 = vrot.lane.b32.xlu0 %v293, 126
      %v299 = vpop.permute.xlu0 %298
      %300 = vrot.lane.b32.xlu0 %v269, 126
      %v301 = vpop.permute.xlu0 %300
      %vm302 = vcmask 1031168
      %v303 = vsel %vm302, %v295, %v297
      %v304 = vsel %vm302, %v297, %v299
      %v305 = vsel %vm302, %v299, %v301
      %v306 = vcombine.low %v278, %v278
      %307 = vrot.lane.b32.xlu0 %v306, 110
      %v308 = vpop.permute.xlu0 %307
      %309 = vrot.lane.b32.xlu0 %v278, 110
      %v310 = vpop.permute.xlu0 %309
      %311 = vrot.lane.b32.xlu0 %v292, 110
      %v312 = vpop.permute.xlu0 %311
      %313 = vrot.lane.b32.xlu0 %v262, 110
      %v314 = vpop.permute.xlu0 %313
      %vm315 = vcmask 900096
      %v316 = vsel %vm315, %v308, %v310
      %v317 = vsel %vm315, %v310, %v312
      %v318 = vsel %vm315, %v312, %v314
      %v319 = vcombine.high %v269, %v269
      %320 = vrot.lane.b32.xlu0 %v262, 109
      %v321 = vpop.permute.xlu0 %320
      %322 = vrot.lane.b32.xlu0 %v270, 109
      %v323 = vpop.permute.xlu0 %322
      %324 = vrot.lane.b32.xlu0 %v269, 109
      %v325 = vpop.permute.xlu0 %324
      %326 = vrot.lane.b32.xlu0 %v319, 109
      %v327 = vpop.permute.xlu0 %326
      %vm328 = vcmask 891904
      %v329 = vsel %vm328, %v321, %v323
      %v330 = vsel %vm328, %v323, %v325
      %v331 = vsel %vm328, %v325, %v327
      %332 = vrot.lane.b32.xlu0 %v278, 108
      %v333 = vpop.permute.xlu0 %332
      %334 = vrot.lane.b32.xlu0 %v279, 108
      %v335 = vpop.permute.xlu0 %334
      %336 = vrot.lane.b32.xlu0 %v262, 108
      %v337 = vpop.permute.xlu0 %336
      %338 = vrot.lane.b32.xlu0 %v270, 108
      %v339 = vpop.permute.xlu0 %338
      %vm340 = vcmask 883712
      %v341 = vsel %vm340, %v333, %v335
      %v342 = vsel %vm340, %v335, %v337
      %v343 = vsel %vm340, %v337, %v339
      %344 = vrot.lane.b32.xlu0 %v292, 92
      %v345 = vpop.permute.xlu0 %344
      %346 = vrot.lane.b32.xlu0 %v262, 92
      %v347 = vpop.permute.xlu0 %346
      %348 = vrot.lane.b32.xlu0 %v293, 92
      %v349 = vpop.permute.xlu0 %348
      %350 = vrot.lane.b32.xlu0 %v269, 92
      %v351 = vpop.permute.xlu0 %350
      %vm352 = vcmask 752640
      %v353 = vsel %vm352, %v345, %v347
      %v354 = vsel %vm352, %v347, %v349
      %v355 = vsel %vm352, %v349, %v351
      %356 = vrot.lane.b32.xlu0 %v306, 91
      %v357 = vpop.permute.xlu0 %356
      %358 = vrot.lane.b32.xlu0 %v278, 91
      %v359 = vpop.permute.xlu0 %358
      %360 = vrot.lane.b32.xlu0 %v292, 91
      %v361 = vpop.permute.xlu0 %360
      %362 = vrot.lane.b32.xlu0 %v262, 91
      %v363 = vpop.permute.xlu0 %362
      %vm364 = vcmask 744448
      %v365 = vsel %vm364, %v357, %v359
      %v366 = vsel %vm364, %v359, %v361
      %v367 = vsel %vm364, %v361, %v363
      %368 = vrot.lane.b32.xlu0 %v262, 90
      %v369 = vpop.permute.xlu0 %368
      %370 = vrot.lane.b32.xlu0 %v270, 90
      %v371 = vpop.permute.xlu0 %370
      %372 = vrot.lane.b32.xlu0 %v269, 90
      %v373 = vpop.permute.xlu0 %372
      %374 = vrot.lane.b32.xlu0 %v319, 90
      %v375 = vpop.permute.xlu0 %374
      %vm376 = vcmask 736256
      %v377 = vsel %vm376, %v369, %v371
      %v378 = vsel %vm376, %v371, %v373
      %v379 = vsel %vm376, %v373, %v375
      %vm380 = vcmask 1041408
      %v383 = vsel %vm380, %v262, %v289
      %v386 = vsel %vm380, %v270, %v290
      %v389 = vsel %vm380, %v269, %v291
      %vm390 = vcmask 1043456
      %v392 = vsel %vm390, %v383, %v303
      %v394 = vsel %vm390, %v386, %v304
      %v396 = vsel %vm390, %v389, %v305
      %vm397 = vcmask 1045504
      %v399 = vsel %vm397, %v392, %v316
      %v402 = vsel %vm397, %v394, %v317
      %v405 = vsel %vm397, %v396, %v318
      %v409 = vsel %vm380, %v329, %v341
      %v412 = vsel %vm380, %v330, %v342
      %v415 = vsel %vm380, %v331, %v343
      %v417 = vsel %vm390, %v409, %v353
      %v419 = vsel %vm390, %v412, %v354
      %v421 = vsel %vm390, %v415, %v355
      %v423 = vsel %vm397, %v417, %v365
      %v426 = vsel %vm397, %v419, %v366
      %v429 = vsel %vm397, %v421, %v367
      %v431 = vld [vmem:[%s1] sm:$0x3]
      %v432 = vld [vmem:[%s2] sm:$0xf]
      %434 = vset.pattern.permute.xlu0 0
      %435 = vperm.xlu0 %434, %v432
      %v436 = vpop.permute.xlu0 %435
      %vm438 = vcmask 293888
      %v440 = vsel %vm438, %v431, 0
      %v443 = vsel %vm380, %v377, 0
      %v446 = vsel %vm380, %v378, 0
      %v449 = vsel %vm380, %v379, 0
      %451 = vmatprep.subr.bf16.mxu0 %v402
      %452 = vmatpush1.bf16.msra.mxu0 %v399
      %453 = vmatprep.subr.bf16.mxu0 %v426
      %454 = vmatpush1.bf16.msra.mxu0 %v423
      %455 = vmatprep.subr.bf16.mxu0 %v446
      %456 = vmatpush1.bf16.msra.mxu0 %v443
      %457 = vmatprep.subr.bf16.mxu0 0
      %458 = vmatpush1.bf16.msra.mxu0 0
      %459 = vmatprep.subr.bf16.mxu0 0
      %460 = vmatpush1.bf16.msra.mxu0 0
      %461 = vmatprep.subr.bf16.mxu0 0
      %462 = vmatpush1.bf16.msra.mxu0 0
      %463 = vmatprep.subr.bf16.mxu0 0
      %464 = vmatpush1.bf16.msra.mxu0 0
      %465 = vmatprep.subr.bf16.mxu0 0
      %466 = vmatpush1.bf16.msra.mxu0 0
      %467 = vmatprep.subr.bf16.mxu0 0
      %468 = vmatpush1.bf16.msra.mxu0 0
      %469 = vmatprep.subr.bf16.mxu0 0
      %470 = vmatpush1.bf16.msra.mxu0 0
      %471 = vmatprep.subr.bf16.mxu0 0
      %472 = vmatpush1.bf16.msra.mxu0 0
      %473 = vmatprep.subr.bf16.mxu0 0
      %474 = vmatpush1.bf16.msra.mxu0 0
      %475 = vmatprep.subr.bf16.mxu0 0
      %476 = vmatpush1.bf16.msra.mxu0 0
      %477 = vmatprep.subr.bf16.mxu0 0
      %478 = vmatpush1.bf16.msra.mxu0 0
      %479 = vmatprep.subr.bf16.mxu0 0
      %480 = vmatpush1.bf16.msra.mxu0 0
      %481 = vmatprep.subr.bf16.mxu0 0
      %482 = vmatpush1.bf16.msra.mxu0 0
      %483 = vmatprep.mubr.bf16.mxu0 0
      %484 = vmatmul.mubr.bf16.gmra.mrb[0].mxu0 %v440
      %v485 = vpop.f32.mrb[0].mxu0
      %v486 = vadd.f32 %v436, %v485
      %v487 = vpop.f32.mrb[0].mxu0
      %v488 = vadd.f32 %v436, %v487
      %v489 = vpop.f32.mrb[0].mxu0
      %v490 = vpop.f32.mrb[0].mxu0
      %491 = vdwg.mxu0
      %492 = vmatprep.subr.bf16.mxu0 0
      %493 = vmatpush1.bf16.msra.mxu0 %v405
      %494 = vmatprep.subr.bf16.mxu0 0
      %495 = vmatpush1.bf16.msra.mxu0 %v429
      %496 = vmatprep.subr.bf16.mxu0 0
      %497 = vmatpush1.bf16.msra.mxu0 %v449
      %498 = vmatprep.subr.bf16.mxu0 0
      %499 = vmatpush1.bf16.msra.mxu0 0
      %500 = vmatprep.subr.bf16.mxu0 0
      %501 = vmatpush1.bf16.msra.mxu0 0
      %502 = vmatprep.subr.bf16.mxu0 0
      %503 = vmatpush1.bf16.msra.mxu0 0
      %504 = vmatprep.subr.bf16.mxu0 0
      %505 = vmatpush1.bf16.msra.mxu0 0
      %506 = vmatprep.subr.bf16.mxu0 0
      %507 = vmatpush1.bf16.msra.mxu0 0
      %508 = vmatprep.subr.bf16.mxu0 0
      %509 = vmatpush1.bf16.msra.mxu0 0
      %510 = vmatprep.subr.bf16.mxu0 0
      %511 = vmatpush1.bf16.msra.mxu0 0
      %512 = vmatprep.subr.bf16.mxu0 0
      %513 = vmatpush1.bf16.msra.mxu0 0
      %514 = vmatprep.subr.bf16.mxu0 0
      %515 = vmatpush1.bf16.msra.mxu0 0
      %516 = vmatprep.subr.bf16.mxu0 0
      %517 = vmatpush1.bf16.msra.mxu0 0
      %518 = vmatprep.subr.bf16.mxu0 0
      %519 = vmatpush1.bf16.msra.mxu0 0
      %520 = vmatprep.subr.bf16.mxu0 0
      %521 = vmatpush1.bf16.msra.mxu0 0
      %522 = vmatprep.subr.bf16.mxu0 0
      %523 = vmatpush1.bf16.msra.mxu0 0
      %524 = vmatprep.mubr.bf16.mxu0 0
      %525 = vmatmul.mubr.bf16.gmra.mrb[0].mxu0 %v440
      %v526 = vpop.f32.mrb[0].mxu0
      %v527 = vadd.f32 %v436, %v526
      %v528 = vpop.f32.mrb[0].mxu0
      %v529 = vpop.f32.mrb[0].mxu0
      %v530 = vpop.f32.mrb[0].mxu0
      %531 = vdwg.mxu0
      %v532 = vmax.f32 %v486, 0.0
      %v533 = vmax.f32 %v488, 0.0
      %v534 = vmax.f32 %v527, 0.0
      %v535 = vld [vmem:[%s5] sm:$0x7]
      %v537 = vlaneseq
      %v538 = vshrl.u32 %v537, 7
      %v539 = vsub.s32 0, %v538
      %v540 = vrot.slane %v535, %v539
      %v541 = vlaneseq
      %v542 = vshrl.u32 %v541, 7
      %v543 = vsub.s32 1, %v542
      %v544 = vrot.slane %v535, %v543
      %v545 = vlaneseq
      %v546 = vshrl.u32 %v545, 7
      %v547 = vsub.s32 2, %v546
      %v548 = vrot.slane %v535, %v547
      %v552 = vmul.f32 %v532, %v540
      %v553 = vmul.f32 %v533, %v544
      %v554 = vmul.f32 %v534, %v548
      %v555 = vpack.c.bf16 %v552, %v552
      %v556 = vpack.c.bf16 %v553, %v553
      %v557 = vpack.c.bf16 %v554, %v554
      %561 = vrot.lane.b32.xlu0 %v555, 19
      %v562 = vpop.permute.xlu0 %561
      %563 = vrot.lane.b32.xlu0 %v556, 19
      %v564 = vpop.permute.xlu0 %563
      %565 = vrot.lane.b32.xlu0 %v557, 19
      %v566 = vpop.permute.xlu0 %565
      %vm567 = vcmask 154624
      %v568 = vsel %vm567, %v562, %v564
      %v569 = vsel %vm567, %v564, %v566
      %vm570 = vcmask 154624
      %v573 = vsel %vm570, 0, %v562
      %v575 = vsel %vm570, %v566, 0
      %v578 = vrot.slane %v573, 6
      %v579 = vrot.slane %v568, 6
      %v580 = vrot.slane %v569, 6
      %v581 = vrot.slane %v575, 6
      %582 = vrot.lane.b32.xlu0 %v578, 127
      %v583 = vpop.permute.xlu0 %582
      %584 = vrot.lane.b32.xlu0 %v579, 127
      %v585 = vpop.permute.xlu0 %584
      %586 = vrot.lane.b32.xlu0 %v580, 127
      %v587 = vpop.permute.xlu0 %586
      %588 = vrot.lane.b32.xlu0 %v581, 127
      %v589 = vpop.permute.xlu0 %588
      %v590 = vsel %vm288, %v583, %v585
      %v591 = vsel %vm288, %v585, %v587
      %v592 = vsel %vm288, %v587, %v589
      %v593 = vrot.slane %v573, 4
      %v594 = vrot.slane %v568, 4
      %v595 = vrot.slane %v569, 4
      %v596 = vrot.slane %v575, 4
      %597 = vrot.lane.b32.xlu0 %v593, 126
      %v598 = vpop.permute.xlu0 %597
      %599 = vrot.lane.b32.xlu0 %v594, 126
      %v600 = vpop.permute.xlu0 %599
      %601 = vrot.lane.b32.xlu0 %v595, 126
      %v602 = vpop.permute.xlu0 %601
      %603 = vrot.lane.b32.xlu0 %v596, 126
      %v604 = vpop.permute.xlu0 %603
      %v605 = vsel %vm302, %v598, %v600
      %v606 = vsel %vm302, %v600, %v602
      %v607 = vsel %vm302, %v602, %v604
      %v608 = vrot.slane %v573, 2
      %v609 = vrot.slane %v568, 2
      %v610 = vrot.slane %v569, 2
      %v611 = vrot.slane %v575, 2
      %612 = vrot.lane.b32.xlu0 %v608, 110
      %v613 = vpop.permute.xlu0 %612
      %614 = vrot.lane.b32.xlu0 %v609, 110
      %v615 = vpop.permute.xlu0 %614
      %616 = vrot.lane.b32.xlu0 %v610, 110
      %v617 = vpop.permute.xlu0 %616
      %618 = vrot.lane.b32.xlu0 %v611, 110
      %v619 = vpop.permute.xlu0 %618
      %v620 = vsel %vm315, %v613, %v615
      %v621 = vsel %vm315, %v615, %v617
      %v622 = vsel %vm315, %v617, %v619
      %623 = vrot.lane.b32.xlu0 %v573, 109
      %v624 = vpop.permute.xlu0 %623
      %625 = vrot.lane.b32.xlu0 %v568, 109
      %v626 = vpop.permute.xlu0 %625
      %627 = vrot.lane.b32.xlu0 %v569, 109
      %v628 = vpop.permute.xlu0 %627
      %629 = vrot.lane.b32.xlu0 %v575, 109
      %v630 = vpop.permute.xlu0 %629
      %v631 = vsel %vm328, %v624, %v626
      %v632 = vsel %vm328, %v626, %v628
      %v633 = vsel %vm328, %v628, %v630
      %634 = vrot.lane.b32.xlu0 %v578, 108
      %v635 = vpop.permute.xlu0 %634
      %636 = vrot.lane.b32.xlu0 %v579, 108
      %v637 = vpop.permute.xlu0 %636
      %638 = vrot.lane.b32.xlu0 %v580, 108
      %v639 = vpop.permute.xlu0 %638
      %640 = vrot.lane.b32.xlu0 %v581, 108
      %v641 = vpop.permute.xlu0 %640
      %v642 = vsel %vm340, %v635, %v637
      %v643 = vsel %vm340, %v637, %v639
      %v644 = vsel %vm340, %v639, %v641
      %645 = vrot.lane.b32.xlu0 %v593, 92
      %v646 = vpop.permute.xlu0 %645
      %647 = vrot.lane.b32.xlu0 %v594, 92
      %v648 = vpop.permute.xlu0 %647
      %649 = vrot.lane.b32.xlu0 %v595, 92
      %v650 = vpop.permute.xlu0 %649
      %651 = vrot.lane.b32.xlu0 %v596, 92
      %v652 = vpop.permute.xlu0 %651
      %v653 = vsel %vm352, %v646, %v648
      %v654 = vsel %vm352, %v648, %v650
      %v655 = vsel %vm352, %v650, %v652
      %656 = vrot.lane.b32.xlu0 %v608, 91
      %v657 = vpop.permute.xlu0 %656
      %658 = vrot.lane.b32.xlu0 %v609, 91
      %v659 = vpop.permute.xlu0 %658
      %660 = vrot.lane.b32.xlu0 %v610, 91
      %v661 = vpop.permute.xlu0 %660
      %662 = vrot.lane.b32.xlu0 %v611, 91
      %v663 = vpop.permute.xlu0 %662
      %v664 = vsel %vm364, %v657, %v659
      %v665 = vsel %vm364, %v659, %v661
      %v666 = vsel %vm364, %v661, %v663
      %667 = vrot.lane.b32.xlu0 %v573, 90
      %v668 = vpop.permute.xlu0 %667
      %669 = vrot.lane.b32.xlu0 %v568, 90
      %v670 = vpop.permute.xlu0 %669
      %671 = vrot.lane.b32.xlu0 %v569, 90
      %v672 = vpop.permute.xlu0 %671
      %673 = vrot.lane.b32.xlu0 %v575, 90
      %v674 = vpop.permute.xlu0 %673
      %v675 = vsel %vm376, %v668, %v670
      %v676 = vsel %vm376, %v670, %v672
      %v677 = vsel %vm376, %v672, %v674
      %v679 = vsel %vm380, %v573, %v590
      %v682 = vsel %vm380, %v568, %v591
      %v685 = vsel %vm380, %v569, %v592
      %v687 = vsel %vm390, %v679, %v605
      %v689 = vsel %vm390, %v682, %v606
      %v691 = vsel %vm390, %v685, %v607
      %v693 = vsel %vm397, %v687, %v620
      %v696 = vsel %vm397, %v689, %v621
      %v699 = vsel %vm397, %v691, %v622
      %v703 = vsel %vm380, %v631, %v642
      %v706 = vsel %vm380, %v632, %v643
      %v709 = vsel %vm380, %v633, %v644
      %v711 = vsel %vm390, %v703, %v653
      %v713 = vsel %vm390, %v706, %v654
      %v715 = vsel %vm390, %v709, %v655
      %v717 = vsel %vm397, %v711, %v664
      %v720 = vsel %vm397, %v713, %v665
      %v723 = vsel %vm397, %v715, %v666
      %v725 = vld [vmem:[%s3] sm:$0x3]
      %v726 = vld [vmem:[%s4] sm:$0xf]
      %728 = vset.pattern.permute.xlu0 0
      %729 = vperm.xlu0 %728, %v726
      %v730 = vpop.permute.xlu0 %729
      %v733 = vsel %vm438, %v725, 0
      %v736 = vsel %vm380, %v675, 0
      %v739 = vsel %vm380, %v676, 0
      %v742 = vsel %vm380, %v677, 0
      %744 = vmatprep.subr.bf16.mxu0 %v696
      %745 = vmatpush1.bf16.msra.mxu0 %v693
      %746 = vmatprep.subr.bf16.mxu0 %v720
      %747 = vmatpush1.bf16.msra.mxu0 %v717
      %748 = vmatprep.subr.bf16.mxu0 %v739
      %749 = vmatpush1.bf16.msra.mxu0 %v736
      %750 = vmatprep.subr.bf16.mxu0 0
      %751 = vmatpush1.bf16.msra.mxu0 0
      %752 = vmatprep.subr.bf16.mxu0 0
      %753 = vmatpush1.bf16.msra.mxu0 0
      %754 = vmatprep.subr.bf16.mxu0 0
      %755 = vmatpush1.bf16.msra.mxu0 0
      %756 = vmatprep.subr.bf16.mxu0 0
      %757 = vmatpush1.bf16.msra.mxu0 0
      %758 = vmatprep.subr.bf16.mxu0 0
      %759 = vmatpush1.bf16.msra.mxu0 0
      %760 = vmatprep.subr.bf16.mxu0 0
      %761 = vmatpush1.bf16.msra.mxu0 0
      %762 = vmatprep.subr.bf16.mxu0 0
      %763 = vmatpush1.bf16.msra.mxu0 0
      %764 = vmatprep.subr.bf16.mxu0 0
      %765 = vmatpush1.bf16.msra.mxu0 0
      %766 = vmatprep.subr.bf16.mxu0 0
      %767 = vmatpush1.bf16.msra.mxu0 0
      %768 = vmatprep.subr.bf16.mxu0 0
      %769 = vmatpush1.bf16.msra.mxu0 0
      %770 = vmatprep.subr.bf16.mxu0 0
      %771 = vmatpush1.bf16.msra.mxu0 0
      %772 = vmatprep.subr.bf16.mxu0 0
      %773 = vmatpush1.bf16.msra.mxu0 0
      %774 = vmatprep.subr.bf16.mxu0 0
      %775 = vmatpush1.bf16.msra.mxu0 0
      %776 = vmatprep.mubr.bf16.mxu0 0
      %777 = vmatmul.mubr.bf16.gmra.mrb[0].mxu0 %v733
      %v778 = vpop.f32.mrb[0].mxu0
      %v779 = vadd.f32 %v730, %v778
      %v780 = vpop.f32.mrb[0].mxu0
      %v781 = vadd.f32 %v730, %v780
      %v782 = vpop.f32.mrb[0].mxu0
      %v783 = vpop.f32.mrb[0].mxu0
      %784 = vdwg.mxu0
      %785 = vmatprep.subr.bf16.mxu0 0
      %786 = vmatpush1.bf16.msra.mxu0 %v699
      %787 = vmatprep.subr.bf16.mxu0 0
      %788 = vmatpush1.bf16.msra.mxu0 %v723
      %789 = vmatprep.subr.bf16.mxu0 0
      %790 = vmatpush1.bf16.msra.mxu0 %v742
      %791 = vmatprep.subr.bf16.mxu0 0
      %792 = vmatpush1.bf16.msra.mxu0 0
      %793 = vmatprep.subr.bf16.mxu0 0
      %794 = vmatpush1.bf16.msra.mxu0 0
      %795 = vmatprep.subr.bf16.mxu0 0
      %796 = vmatpush1.bf16.msra.mxu0 0
      %797 = vmatprep.subr.bf16.mxu0 0
      %798 = vmatpush1.bf16.msra.mxu0 0
      %799 = vmatprep.subr.bf16.mxu0 0
      %800 = vmatpush1.bf16.msra.mxu0 0
      %801 = vmatprep.subr.bf16.mxu0 0
      %802 = vmatpush1.bf16.msra.mxu0 0
      %803 = vmatprep.subr.bf16.mxu0 0
      %804 = vmatpush1.bf16.msra.mxu0 0
      %805 = vmatprep.subr.bf16.mxu0 0
      %806 = vmatpush1.bf16.msra.mxu0 0
      %807 = vmatprep.subr.bf16.mxu0 0
      %808 = vmatpush1.bf16.msra.mxu0 0
      %809 = vmatprep.subr.bf16.mxu0 0
      %810 = vmatpush1.bf16.msra.mxu0 0
      %811 = vmatprep.subr.bf16.mxu0 0
      %812 = vmatpush1.bf16.msra.mxu0 0
      %813 = vmatprep.subr.bf16.mxu0 0
      %814 = vmatpush1.bf16.msra.mxu0 0
      %815 = vmatprep.subr.bf16.mxu0 0
      %816 = vmatpush1.bf16.msra.mxu0 0
      %817 = vmatprep.mubr.bf16.mxu0 0
      %818 = vmatmul.mubr.bf16.gmra.mrb[0].mxu0 %v733
      %v819 = vpop.f32.mrb[0].mxu0
      %v820 = vadd.f32 %v730, %v819
      %v821 = vpop.f32.mrb[0].mxu0
      %v822 = vpop.f32.mrb[0].mxu0
      %v823 = vpop.f32.mrb[0].mxu0
      %824 = vdwg.mxu0
      %v825 = vmax.f32 %v779, 0.0
      %v826 = vmax.f32 %v781, 0.0
      %v827 = vmax.f32 %v820, 0.0
      %829 = vrot.lane.b32.xlu0 %v825, 126
      %v830 = vpop.permute.xlu0 %829
      %832 = vrot.lane.b32.xlu0 %v825, 124
      %v833 = vpop.permute.xlu0 %832
      %835 = vrot.lane.b32.xlu0 %v825, 122
      %v836 = vpop.permute.xlu0 %835
      %838 = vrot.lane.b32.xlu0 %v825, 120
      %v839 = vpop.permute.xlu0 %838
      %841 = vrot.lane.b32.xlu0 %v825, 118
      %v842 = vpop.permute.xlu0 %841
      %844 = vrot.lane.b32.xlu0 %v825, 116
      %v845 = vpop.permute.xlu0 %844
      %848 = vrot.lane.b32.xlu0 %v825, 114
      %v849 = vpop.permute.xlu0 %848
      %850 = vrot.lane.b32.xlu0 %v826, 114
      %v851 = vpop.permute.xlu0 %850
      %vm852 = vcmask 932864
      %v853 = vsel %vm852, %v849, %v851
      %855 = vrot.lane.b32.xlu0 %v826, 112
      %v856 = vpop.permute.xlu0 %855
      %858 = vrot.lane.b32.xlu0 %v826, 110
      %v859 = vpop.permute.xlu0 %858
      %861 = vrot.lane.b32.xlu0 %v826, 108
      %v862 = vpop.permute.xlu0 %861
      %864 = vrot.lane.b32.xlu0 %v826, 106
      %v865 = vpop.permute.xlu0 %864
      %867 = vrot.lane.b32.xlu0 %v826, 104
      %v868 = vpop.permute.xlu0 %867
      %870 = vrot.lane.b32.xlu0 %v826, 102
      %v871 = vpop.permute.xlu0 %870
      %874 = vrot.lane.b32.xlu0 %v826, 100
      %v875 = vpop.permute.xlu0 %874
      %876 = vrot.lane.b32.xlu0 %v827, 100
      %v877 = vpop.permute.xlu0 %876
      %vm878 = vcmask 818176
      %v879 = vsel %vm878, %v875, %v877
      %881 = vrot.lane.b32.xlu0 %v827, 98
      %v882 = vpop.permute.xlu0 %881
      %vm884 = vcmask 130048
      %v885 = vsel %vm884, %v825, %v830
      %vm886 = vcmask 261120
      %v887 = vsel %vm886, %v885, %v833
      %vm888 = vcmask 392192
      %v889 = vsel %vm888, %v887, %v836
      %vm890 = vcmask 523264
      %v891 = vsel %vm890, %v889, %v839
      %vm892 = vcmask 654336
      %v893 = vsel %vm892, %v891, %v842
      %vm894 = vcmask 785408
      %v895 = vsel %vm894, %v893, %v845
      %vm896 = vcmask 916480
      %v897 = vsel %vm896, %v895, %v853
      %v898 = vsel %vm884, %v856, %v859
      %v899 = vsel %vm886, %v898, %v862
      %v900 = vsel %vm888, %v899, %v865
      %v901 = vsel %vm890, %v900, %v868
      %v902 = vsel %vm892, %v901, %v871
      %v903 = vsel %vm894, %v902, %v879
      %v904 = vsel %vm896, %v903, %v882
      %v907 = vcombine.low %v897, %v904
      %909 = vst [vmem:[%s251] sm:$0xff] %v907
      %p910 = scmp.lt.s32.totalorder %s17, 1
      %s911 = scalar_select %p910, %s17, 1
      %s912 = smul.addr %s911, 2
      %s913 = smul.addr %s912, 4
      %s914 = scalar_lea.vmem %s6, %s913
      // Predicated region
      $region45: #{resblock_forward.1} parent=43 // pred_check
        %p915 = pneg %p166
      $region46: #{resblock_forward.1} parent=43 // pred_check_branch
        %917 = sbr.rel (%p915) target = $region48
      $region47: #{resblock_forward.1} parent=43 // pred_region
        _
      $region48: #{resblock_forward.1} parent=43 // pred_fallthru
        _
    $region44: #{resblock_forward.1} parent=5 // pred_fallthru
      _
    %p918 = scmp.le.s32.totalorder 2, %s12
    // Predicated region
    $region49: #{resblock_forward.1} parent=5 // pred_check
      %p919 = pneg %p918
    $region50: #{resblock_forward.1} parent=5 // pred_check_branch
      %921 = sbr.rel (%p919) target = $region52
    $region51: #{resblock_forward.1} parent=5 // pred_region
      %s922 = ssub.s32 %s12, 2
      // Predicated region
      $region53: #{resblock_forward.1} parent=51 // pred_check
        %p923 = pneg %p172
      $region54: #{resblock_forward.1} parent=51 // pred_check_branch
        %925 = sbr.rel (%p923) target = $region56
      $region55: #{resblock_forward.1} parent=51 // pred_region
        %p926 = scmp.lt.s32.totalorder %s18, 1
        %s927 = scalar_select %p926, %s18, 1
        %s928 = smul.addr %s927, 2
        %s929 = smul.addr %s928, 4
        %s930 = scalar_lea.vmem %s6, %s929
      $region56: #{resblock_forward.1} parent=51 // pred_fallthru
        _
    $region52: #{resblock_forward.1} parent=5 // pred_fallthru
      _
  $region6: #{resblock_forward.1} parent=0 // loop_footer
    %s16 = sadd.s32 1, %s12
  $region7: #{resblock_forward.1} parent=0 // loop_footer_branch
    %11 = sbr.rel target = $region3
  $region8: #{resblock_forward.1} parent=0 // loop_exit
    _

</llo_original>
